<compile_context>
chip_gen: v5e
topology: v5e:2x2
jax: 0.10.0
libtpu: 0.0.40
codegen_flags: <defaults>
</compile_context>

<pallas_src>
import functools
import math

import jax
import jax.numpy as jnp
from jax.experimental import pallas as pl
from jax.experimental.pallas import tpu as pltpu


HIDDEN_STATES = 32                       # hidden_size of the LSTMCell
INPUT_SIZE = HIDDEN_STATES + 1 + 2       # = hidden_states + 3 (per module __init__)
BATCH = 8

T_START, T_END, N_EPOCHS = 1.0, 0.1, 15
TEMPERATURE_SCHEDULE = [T_START - (T_START - T_END) * (i / N_EPOCHS) for i in range(N_EPOCHS)]
assert min(TEMPERATURE_SCHEDULE) > 0.0   # softmax temperature must stay positive


# ----------------------------------------------------------------------------
# Kernels
# ----------------------------------------------------------------------------
def _ldfm_kernel(x_ref, w_ref, b_ref, out_ref, *, inv_temp):
    """Single-temperature kernel (1/T baked as a trace-time constant).

    x_ref   : VMEM (B, input_size)   f32
    w_ref   : VMEM (input_size, 2H)  f32   fused [i | g] gate weights
    b_ref   : VMEM (1, 2H)           f32   fused [i | g] combined bias
    out_ref : VMEM (B, H)            f32   softmax(c / T, axis=-1)
    """
    H = HIDDEN_STATES

    # One fused MXU pass for both gates.
    gates = jnp.dot(x_ref[...], w_ref[...], preferred_element_type=jnp.float32) + b_ref[...]

    # c_new = sigmoid(i) * tanh(g)   (f * c0 term vanishes because c0 == 0)
    c_new = jax.nn.sigmoid(gates[:, :H]) * jnp.tanh(gates[:, H:])

    # Tempered softmax, exact normalization (row sums == 1 to f32 precision).
    logits = c_new * inv_temp
    logits = logits - jnp.max(logits, axis=-1, keepdims=True)
    e = jnp.exp(logits)
    inv_denom = 1.0 / jnp.sum(e, axis=-1, keepdims=True)
    out_ref[...] = (e * inv_denom).astype(out_ref.dtype)


def _ldfm_all_epochs_kernel(inv_temps_ref, x_ref, w_ref, b_ref, out_ref):
    """All temperatures in ONE invocation (no grid).

    inv_temps_ref : VMEM (N_EPOCHS, 1, 1) f32   reciprocal temperatures
    x_ref         : VMEM (B, input_size)  f32
    w_ref         : VMEM (input_size, 2H) f32
    b_ref         : VMEM (1, 2H)          f32
    out_ref       : VMEM (N_EPOCHS, B, H) f32   written with a single store
    """
    H = HIDDEN_STATES

    # Gates / activations computed once, shared by every temperature.
    gates = jnp.dot(x_ref[...], w_ref[...], preferred_element_type=jnp.float32) + b_ref[...]
    c_new = jax.nn.sigmoid(gates[:, :H]) * jnp.tanh(gates[:, H:])          # (B, H)

    # Broadcast over the temperature axis: (E,1,1) * (1,B,H) -> (E,B,H).
    logits = c_new[None, :, :] * inv_temps_ref[...]
    logits = logits - jnp.max(logits, axis=-1, keepdims=True)
    e = jnp.exp(logits)
    inv_denom = 1.0 / jnp.sum(e, axis=-1, keepdims=True)
    out_ref[...] = (e * inv_denom).astype(out_ref.dtype)                   # one store


# ----------------------------------------------------------------------------
# Parameter preparation (done ONCE, outside the forward path)
# ----------------------------------------------------------------------------
def init_params(key):
    """Deterministic LSTMCell params, PyTorch-style uniform(-1/sqrt(H), 1/sqrt(H))."""
    k1, k2, k3, k4 = jax.random.split(key, 4)
    bound = 1.0 / math.sqrt(HIDDEN_STATES)
    return {
        "w_ih": jax.random.uniform(k1, (4 * HIDDEN_STATES, INPUT_SIZE), jnp.float32, -bound, bound),
        "w_hh": jax.random.uniform(k2, (4 * HIDDEN_STATES, HIDDEN_STATES), jnp.float32, -bound, bound),
        "b_ih": jax.random.uniform(k3, (4 * HIDDEN_STATES,), jnp.float32, -bound, bound),
        "b_hh": jax.random.uniform(k4, (4 * HIDDEN_STATES,), jnp.float32, -bound, bound),
    }


def prepare_fused_params(params):
    """Precompute fused/transposed i+g gate weight and bias (hoisted glue).

    PyTorch LSTMCell gate ordering in W_ih / biases: [i, f, g, o] along dim 0.
    Only the i and g gates matter with zero initial (h, c); w_hh is unused.
    """
    H = HIDDEN_STATES
    w_ih, b_ih, b_hh = params["w_ih"], params["b_ih"], params["b_hh"]
    w_i = w_ih[0 * H:1 * H, :]                                   # (H, input_size)
    w_g = w_ih[2 * H:3 * H, :]                                   # (H, input_size)
    w_ig = jnp.transpose(jnp.concatenate([w_i, w_g], axis=0))    # (input_size, 2H)
    b = b_ih + b_hh
    b_ig = jnp.concatenate([b[0 * H:1 * H], b[2 * H:3 * H]]).reshape(1, 2 * H)
    return {
        "w_ig": jnp.asarray(w_ig, jnp.float32),
        "b_ig": jnp.asarray(b_ig, jnp.float32),
    }


# ----------------------------------------------------------------------------
# Forward wrappers
# ----------------------------------------------------------------------------
def latent_dirichlet_factor_forward(x, t, fused_params):
    """Mirror of LatentDirichletFactorModel.forward(x, t) for a single epoch t.

    `t` must be a Python int (it indexes the Python-list temperature schedule,
    exactly like the PyTorch module).
    """
    assert isinstance(t, int), "t indexes the Python temperature schedule at trace time"
    B = x.shape[0]
    inv_temp = 1.0 / TEMPERATURE_SCHEDULE[t]                     # baked constant

    return pl.pallas_call(
        functools.partial(_ldfm_kernel, inv_temp=inv_temp),
        out_shape=jax.ShapeDtypeStruct((B, HIDDEN_STATES), jnp.float32),
        in_specs=[
            pl.BlockSpec(memory_space=pltpu.MemorySpace.VMEM),   # x
            pl.BlockSpec(memory_space=pltpu.MemorySpace.VMEM),   # w_ig
            pl.BlockSpec(memory_space=pltpu.MemorySpace.VMEM),   # b_ig
        ],
        out_specs=pl.BlockSpec(memory_space=pltpu.MemorySpace.VMEM),
    )(x, fused_params["w_ig"], fused_params["b_ig"])


def latent_dirichlet_factor_forward_all_epochs(x, fused_params):
    """Fused variant: one grid-less pallas_call producing every temperature step.

    The matmul + activations are computed once and broadcast over the 15
    reciprocal temperatures inside the kernel; the (N_EPOCHS, B, H) result is
    written with a single store.  Returns (N_EPOCHS, B, H).
    """
    B = x.shape[0]
    inv_temps = jnp.array(
        [1.0 / T for T in TEMPERATURE_SCHEDULE], dtype=jnp.float32
    ).reshape(N_EPOCHS, 1, 1)

    return pl.pallas_call(
        _ldfm_all_epochs_kernel,
        out_shape=jax.ShapeDtypeStruct((N_EPOCHS, B, HIDDEN_STATES), jnp.float32),
        in_specs=[
            pl.BlockSpec(memory_space=pltpu.MemorySpace.VMEM),   # inv_temps
            pl.BlockSpec(memory_space=pltpu.MemorySpace.VMEM),   # x
            pl.BlockSpec(memory_space=pltpu.MemorySpace.VMEM),   # w_ig
            pl.BlockSpec(memory_space=pltpu.MemorySpace.VMEM),   # b_ig
        ],
        out_specs=pl.BlockSpec(memory_space=pltpu.MemorySpace.VMEM),
    )(inv_temps, x, fused_params["w_ig"], fused_params["b_ig"])


# ----------------------------------------------------------------------------
# Pure-JAX reference (for correctness check)
# ----------------------------------------------------------------------------
def reference_forward(x, t, params):
    H = HIDDEN_STATES
    gates = x @ params["w_ih"].T + (params["b_ih"] + params["b_hh"])
    i = jax.nn.sigmoid(gates[:, 0 * H:1 * H])
    g = jnp.tanh(gates[:, 2 * H:3 * H])
    c = i * g
    return jax.nn.softmax(c / TEMPERATURE_SCHEDULE[t], axis=-1)


if __name__ == "__main__":
    key = jax.random.PRNGKey(0)
    k_params, k_x = jax.random.split(key)

    params = init_params(k_params)
    fused = prepare_fused_params(params)          # one-time glue, not per call
    x = jax.random.normal(k_x, (BATCH, INPUT_SIZE), dtype=jnp.float32)
    t = 3  # epoch index into the temperature schedule (Python int, as in the module)

    # Single-temperature forward (mirrors module.forward(x, t)).
    out = jax.block_until_ready(latent_dirichlet_factor_forward(x, t, fused))
    assert out.shape == (BATCH, HIDDEN_STATES)

    ref = reference_forward(x, t, params)
    assert bool(jnp.allclose(out, ref, atol=1e-3)), "single-epoch mismatch vs reference"
    assert bool(jnp.allclose(jnp.sum(out, axis=-1), 1.0, atol=1e-3)), "rows must sum to 1"

    # Fused all-epochs forward (one launch, one store for the whole schedule).
    out_all = jax.block_until_ready(latent_dirichlet_factor_forward_all_epochs(x, fused))
    assert out_all.shape == (N_EPOCHS, BATCH, HIDDEN_STATES)
    for tt in (0, t, N_EPOCHS - 1):
        ref_tt = reference_forward(x, tt, params)
        assert bool(jnp.allclose(out_all[tt], ref_tt, atol=1e-3)), f"all-epochs mismatch at t={tt}"
    assert bool(jnp.allclose(jnp.sum(out_all, axis=-1), 1.0, atol=1e-3))

    print("KERNEL_OK")
</pallas_src>

<mosaic_0001>
module attributes {stable_mosaic.version = 11 : i64} {
  func.func @_ldfm_kernel(%arg0: memref<8x35xf32, #tpu.memory_space<vmem>>, %arg1: memref<35x64xf32, #tpu.memory_space<vmem>>, %arg2: memref<1x64xf32, #tpu.memory_space<vmem>>, %arg3: memref<8x32xf32, #tpu.memory_space<vmem>>) attributes {dimension_semantics = [], scalar_prefetch = 0 : i64, scratch_operands = 0 : i64, tpu.core_type = #tpu.core_type<tc>} {
    %c0 = arith.constant 0 : index
    %c0_0 = arith.constant 0 : index
    %0 = vector.load %arg0[%c0, %c0_0] : memref<8x35xf32, #tpu.memory_space<vmem>>, vector<8x35xf32>
    %c0_1 = arith.constant 0 : index
    %c0_2 = arith.constant 0 : index
    %1 = vector.load %arg1[%c0_1, %c0_2] : memref<35x64xf32, #tpu.memory_space<vmem>>, vector<35x64xf32>
    %cst = arith.constant dense<0.000000e+00> : vector<8x64xf32>
    %2 = tpu.matmul %0, %1, %cst {dimension_numbers = #tpu.dot_dimension_numbers<[1], [0], [0], [1], [0, 0, 1, 1], [], []>} : vector<8x35xf32>, vector<35x64xf32>, vector<8x64xf32> -> vector<8x64xf32>
    %c0_3 = arith.constant 0 : index
    %c0_4 = arith.constant 0 : index
    %3 = vector.load %arg2[%c0_3, %c0_4] : memref<1x64xf32, #tpu.memory_space<vmem>>, vector<1x64xf32>
    %4 = vector.broadcast %3 : vector<1x64xf32> to vector<8x64xf32>
    %5 = arith.addf %2, %4 : vector<8x64xf32>
    %6 = vector.extract_strided_slice %5 {offsets = [0, 0], sizes = [8, 32], strides = [1, 1]} : vector<8x64xf32> to vector<8x32xf32>
    %7 = arith.negf %6 : vector<8x32xf32>
    %8 = math.exp %7 : vector<8x32xf32>
    %cst_5 = arith.constant 1.000000e+00 : f32
    %9 = vector.broadcast %cst_5 : f32 to vector<8x32xf32>
    %10 = arith.addf %9, %8 : vector<8x32xf32>
    %11 = arith.divf %9, %10 : vector<8x32xf32>
    %12 = vector.extract_strided_slice %5 {offsets = [0, 32], sizes = [8, 32], strides = [1, 1]} : vector<8x64xf32> to vector<8x32xf32>
    %13 = math.tanh %12 : vector<8x32xf32>
    %14 = arith.mulf %11, %13 : vector<8x32xf32>
    %cst_6 = arith.constant 1.21951222 : f32
    %15 = vector.broadcast %cst_6 : f32 to vector<8x32xf32>
    %16 = arith.mulf %14, %15 : vector<8x32xf32>
    %cst_7 = arith.constant dense<0xFF800000> : vector<8xf32>
    %17 = vector.multi_reduction <maximumf>, %16, %cst_7 [1] : vector<8x32xf32> to vector<8xf32>
    %18 = vector.shape_cast %17 : vector<8xf32> to vector<8x1xf32>
    %19 = vector.broadcast %18 : vector<8x1xf32> to vector<8x32xf32>
    %20 = arith.subf %16, %19 : vector<8x32xf32>
    %21 = math.exp %20 : vector<8x32xf32>
    %cst_8 = arith.constant dense<0.000000e+00> : vector<8xf32>
    %22 = vector.multi_reduction <add>, %21, %cst_8 [1] : vector<8x32xf32> to vector<8xf32>
    %23 = vector.shape_cast %22 : vector<8xf32> to vector<8x1xf32>
    %cst_9 = arith.constant 1.000000e+00 : f32
    %24 = vector.broadcast %cst_9 : f32 to vector<8x1xf32>
    %25 = arith.divf %24, %23 : vector<8x1xf32>
    %26 = vector.broadcast %25 : vector<8x1xf32> to vector<8x32xf32>
    %27 = arith.mulf %21, %26 : vector<8x32xf32>
    %c0_10 = arith.constant 0 : index
    %c0_11 = arith.constant 0 : index
    %28 = vector.load %arg3[%c0_10, %c0_11] : memref<8x32xf32, #tpu.memory_space<vmem>>, vector<8x32xf32>
    tpu.vector_store %arg3[%c0_10, %c0_11], %27 {strides = array<i32>} : memref<8x32xf32, #tpu.memory_space<vmem>>, vector<8x32xf32>,
    return
  }
}

</mosaic_0001>

<llo_original>
// kernel: tpu_custom_call.1
$region0: #{tpu_custom_call.1}
  #allocation0 [shape = 'u32[]', space=smem, size = 0x4, offset = 0x4, fixed_abs, tag = 'smem constant byte address 0x4 - core index']
  #allocation1 [shape = 'u32[72,128]{1,0:T(1,128)}', space=vmem, size = 0x9000, scoped, tag = 'internal scratch']
  %s0 = inlined_call_operand.hbm [shape: f32[8,35], index: 0, kind: input, shape index: {}]
  %s1 = inlined_call_operand.hbm [shape: f32[35,64], index: 1, kind: input, shape index: {}]
  %s2 = inlined_call_operand.vmem [shape: f32[1,64], index: 2, kind: input, shape index: {}]
  %s3 = inlined_call_operand.hbm [shape: f32[8,32], index: 3, kind: output, shape index: {}]
  %s4 = sld [smem:[#allocation0]]
  $region30: #{tpu_custom_call.1} parent=0
    _
  %s6 = ssub.s32 1, %s4
  %s7 = scalar_select 0, %s6, %s4
  $region1: #{tpu_custom_call.1} parent=0
    #allocation2 [shape = 'u8[4096]{0}', space=vmem, size = 0x1000, scoped, tag = 'input window, operand 0, single buffered']
    #allocation3 [shape = 's32[1]{0}', space=sflag, size = 0x4, scoped, tag = 'scoped memory for tpu_custom_call.1']
    #allocation4 [shape = 's32[1]{0}', space=sflag, size = 0x4, scoped, tag = 'scoped memory for tpu_custom_call.1']
    #allocation5 [shape = 'u8[20480]{0}', space=vmem, size = 0x5000, scoped, tag = 'input window, operand 1, single buffered']
    #allocation6 [shape = 's32[1]{0}', space=sflag, size = 0x4, scoped, tag = 'scoped memory for tpu_custom_call.1']
    #allocation7 [shape = 'u8[4096]{0}', space=vmem, size = 0x1000, scoped, tag = 'output window, operand 0, single buffered']
    %8 = vsyncpa [#allocation3], 0
    %9 = vsyncpa [#allocation6], 0
    %10 = vsyncpa [#allocation4], 0
    // Predicated region
    $region2: #{tpu_custom_call.1} parent=1 // pred_check
      _
    $region3: #{tpu_custom_call.1} parent=1 // pred_check_branch
      %12 = sbr.rel (0) target = $region5
    $region4: #{tpu_custom_call.1} parent=1 // pred_region
      %14 = vsyncadd [#allocation3], 0
      %s16 = sshll.u32 %s0, 4
      %s17 = int_to_ptr.hbm [resolvable:$true] %s16
      %s18 = sshll.u32 [#allocation2], 4
      %s19 = int_to_ptr.vmem [resolvable:$true] %s18
      %21 = dma.hbm_to_vmem [thread:$0]  %s17, 128, %s19, [#allocation3]
    $region5: #{tpu_custom_call.1} parent=1 // pred_fallthru
      _
    // Predicated region
    $region6: #{tpu_custom_call.1} parent=1 // pred_check
      _
    $region7: #{tpu_custom_call.1} parent=1 // pred_check_branch
      %23 = sbr.rel (0) target = $region9
    $region8: #{tpu_custom_call.1} parent=1 // pred_region
      %25 = vsyncadd [#allocation6], 0
      %s26 = sshll.u32 %s1, 4
      %s27 = int_to_ptr.hbm [resolvable:$true] %s26
      %s28 = sshll.u32 [#allocation5], 4
      %s29 = int_to_ptr.vmem [resolvable:$true] %s28
      %34 = dma.hbm_to_vmem [thread:$0]  %s27, 640, %s29, [#allocation6], 128, 128, 8
    $region9: #{tpu_custom_call.1} parent=1 // pred_fallthru
      _
    // Predicated region
    $region10: #{tpu_custom_call.1} parent=1 // pred_check
      _
    $region11: #{tpu_custom_call.1} parent=1 // pred_check_branch
      %36 = sbr.rel (0) target = $region13
    $region12: #{tpu_custom_call.1} parent=1 // pred_region
      _
    $region13: #{tpu_custom_call.1} parent=1 // pred_fallthru
      _
    // Predicated region
    $region14: #{tpu_custom_call.1} parent=1 // pred_check
      _
    $region15: #{tpu_custom_call.1} parent=1 // pred_check_branch
      %38 = sbr.rel (0) target = $region17
    $region16: #{tpu_custom_call.1} parent=1 // pred_region
      %40 = dma.done [#allocation3], 128
    $region17: #{tpu_custom_call.1} parent=1 // pred_fallthru
      _
    // Predicated region
    $region18: #{tpu_custom_call.1} parent=1 // pred_check
      _
    $region19: #{tpu_custom_call.1} parent=1 // pred_check_branch
      %42 = sbr.rel (0) target = $region21
    $region20: #{tpu_custom_call.1} parent=1 // pred_region
      %44 = dma.done [#allocation6], 640
    $region21: #{tpu_custom_call.1} parent=1 // pred_fallthru
      _
    %v45 = vld [vmem:[#allocation2] sm:$0xff]
    %v46 = vld [vmem:[#allocation5] sm:$0xff]
    %v47 = vld [vmem:[#allocation5 + $0x8] sm:$0xff]
    %v48 = vld [vmem:[#allocation5 + $0x10] sm:$0xff]
    %v49 = vld [vmem:[#allocation5 + $0x18] sm:$0xff]
    %v50 = vld [vmem:[#allocation5 + $0x20] sm:$0x7]
    %v51 = vld [vmem:[%s2] sm:$0x1]
    %v53 = vperm.slane %v51, 0
    %vm55 = vcmask 285696
    %v57 = vsel %vm55, %v45, 0
    %vm59 = vcmask 1042432
    %v61 = vsel %vm59, %v50, 0
    %63 = vmatpush.msra.mxu0 0.0
    %64 = vmatpush.msra.mxu0 0.0
    %65 = vmatpush.msra.mxu0 0.0
    %66 = vmatpush.msra.mxu0 0.0
    %67 = vmatpush.msra.mxu0 0.0
    %68 = vmatpush.msra.mxu0 0.0
    %69 = vmatpush.msra.mxu0 0.0
    %70 = vmatpush.msra.mxu0 0.0
    %71 = vmatpush.msra.mxu0 0.0
    %72 = vmatpush.msra.mxu0 0.0
    %73 = vmatpush.msra.mxu0 0.0
    %74 = vmatpush.msra.mxu0 %v61
    %75 = vmatpush.msra.mxu0 %v49
    %76 = vmatpush.msra.mxu0 %v48
    %77 = vmatpush.msra.mxu0 %v47
    %78 = vmatpush.msra.mxu0 %v46
    %79 = vmatmul.f32.gmra.mxu0 %v57
    %v80 = vpop.f32.mrf.mxu0
    %v81 = vadd.f32 %v53, %v80
    %82 = vdwg.mxu0
    %v83 = vxor.u32 %v81, 2147483648
    %v84 = vmul.f32 %v83, 1.442695
    %v85 = vpow.pop %v84
    %v86 = vadd.f32 %v85, 1.0
    %v87 = vrcp.pop %v86
    %v88 = vmul.f32 %v86, %v87
    %v89 = vsub.f32 1.0, %v88
    %v90 = vmul.f32 %v87, %v89
    %v91 = vadd.f32 %v87, %v90
    %vm92 = vweird.f32 %v86
    %vm93 = vweird.f32 %v87
    %vm94 = vmor %vm92, %vm93
    %v95 = vsel %vm94, %v87, %v91
    %v96 = vand.u32 2147483647, %v86
    %vm97 = vcmp.eq.f32.partialorder %v96, 8.507059e+37
    %v98 = vand.u32 %v86, 2147483648
    %v99 = vor.u32 1.1754944e-38, %v98
    %v100 = vsel %vm97, %v99, %v95
    %v101 = vmul.f32 1.0, %v100
    %v102 = vtanh.pop %v81
    %104 = vrot.lane.b32.xlu0 %v102, 96
    %v105 = vpop.permute.xlu0 %104
    %v107 = vmul.f32 %v101, %v105
    %v108 = vmul.f32 %v107, 1.2195122
    %vm109 = vcmask 261120
    %v110 = vsel %vm109, %v108, -inf
    %111 = vmax.xlane.f32.xlu0 %v110
    %v112 = vpop.xlane.xlu0 %111
    %v113 = vsub.f32 %v108, %v112
    %v114 = vmul.f32 %v113, 1.442695
    %v115 = vpow.pop %v114
    %v116 = vsel %vm109, %v115, 0.0
    %117 = vadd.xlane.f32.xlu0 %v116
    %v118 = vpop.xlane.xlu0 %117
    %v119 = vrcp.pop %v118
    %v120 = vmul.f32 %v118, %v119
    %v121 = vsub.f32 1.0, %v120
    %v122 = vmul.f32 %v119, %v121
    %v123 = vadd.f32 %v119, %v122
    %vm124 = vweird.f32 %v118
    %vm125 = vweird.f32 %v119
    %vm126 = vmor %vm124, %vm125
    %v127 = vsel %vm126, %v119, %v123
    %v128 = vand.u32 2147483647, %v118
    %vm129 = vcmp.eq.f32.partialorder %v128, 8.507059e+37
    %v130 = vand.u32 %v118, 2147483648
    %v131 = vor.u32 1.1754944e-38, %v130
    %v132 = vsel %vm129, %v131, %v127
    %v133 = vmul.f32 1.0, %v132
    %v134 = vmul.f32 %v115, %v133
    %135 = vst.msk [vmem:[#allocation7] sm:$0xff] %vm109, %v134
    // Predicated region
    $region22: #{tpu_custom_call.1} parent=1 // pred_check
      _
    $region23: #{tpu_custom_call.1} parent=1 // pred_check_branch
      %137 = sbr.rel (0) target = $region25
    $region24: #{tpu_custom_call.1} parent=1 // pred_region
      %139 = vsyncadd [#allocation4], 0
      %s141 = sshll.u32 [#allocation7], 4
      %s142 = int_to_ptr.vmem [resolvable:$true] %s141
      %s143 = sshll.u32 %s3, 4
      %s144 = int_to_ptr.hbm [resolvable:$true] %s143
      %146 = dma.vmem_to_hbm [thread:$0]  %s142, 128, %s144, [#allocation4]
    $region25: #{tpu_custom_call.1} parent=1 // pred_fallthru
      _
    // Predicated region
    $region26: #{tpu_custom_call.1} parent=1 // pred_check
      _
    $region27: #{tpu_custom_call.1} parent=1 // pred_check_branch
      %148 = sbr.rel (0) target = $region29
    $region28: #{tpu_custom_call.1} parent=1 // pred_region
      %150 = dma.done [#allocation4], 128
    $region29: #{tpu_custom_call.1} parent=1 // pred_fallthru
      _
    %151 = vsyncpa [#allocation3], 1
    %152 = vsyncpa [#allocation6], 1
    %153 = vsyncpa [#allocation4], 1

</llo_original>
